<compile_context>
chip_gen: v5e
topology: v5e:2x2
jax: 0.10.0
libtpu: 0.0.40
codegen_flags: <defaults>
</compile_context>

<pallas_src>
import numpy as np
import jax
import jax.numpy as jnp
from jax.experimental import pallas as pl
from jax.experimental.pallas import tpu as pltpu


# --------------------------------------------------------------------------
# Constant gate bases (pure numpy, computed once at import; no runtime XLA).
# RY(t) = cos(t/2)*I + sin(t/2)*J,  J = [[0,-1],[1,0]].
#   L1 = c1c2*B1_0 + c1s2*B1_1 + s1c2*B1_2 + s1s2*B1_3
#   L2 = c3c4*B2_0 + c3s4*B2_1 + s3c4*B2_2 + s3s4*B2_3
#   L3 = c5*B3_0 + s5*B3_1
#   L4 = c6*B4_0 + s6*B4_1
#   L5 = constant (includes the torch reshape/transpose permutation)
# result = L5 @ L4 @ L3 @ L2 @ L1 = LEFT @ RIGHT with
#   LEFT  = sum_ab (l4c[a]*l3c[b]) * (L5 @ B4_a @ B3_b)
#   RIGHT = sum_ij (l2c[i]*l1c[j]) * (B2_i @ B1_j)
# --------------------------------------------------------------------------
_Xg = np.array([[0.0, 1.0], [1.0, 0.0]], dtype=np.float64)
_Ig = np.eye(2, dtype=np.float64)
_Jg = np.array([[0.0, -1.0], [1.0, 0.0]], dtype=np.float64)
_CNOTg = np.array(
    [[1, 0, 0, 0], [0, 1, 0, 0], [0, 0, 0, 1], [0, 0, 1, 0]], dtype=np.float64
)


def _kron(*ms):
    out = ms[0]
    for m in ms[1:]:
        out = np.kron(out, m)
    return out


def _build_mats():
    xx = np.kron(_Xg, _Xg)
    l1_bases = [_kron(xx, _Ig, _Ig), _kron(xx, _Ig, _Jg),
                _kron(xx, _Jg, _Ig), _kron(xx, _Jg, _Jg)]
    l2_bases = [_kron(_Ig, _Ig, _CNOTg), _kron(_Ig, _Jg, _CNOTg),
                _kron(_Jg, _Ig, _CNOTg), _kron(_Jg, _Jg, _CNOTg)]
    l3_bases = [_kron(_CNOTg, _Ig, _Ig), _kron(_CNOTg, _Ig, _Jg)]
    l4_bases = [_kron(_Ig, _Ig, _Ig, _Ig), _kron(_Ig, _Jg, _Ig, _Ig)]
    # layer 5: torch reshape(2,)*8, transpose(1,2), transpose(5,6), reshape(16,16)
    l5 = _kron(_Ig, _Ig, _CNOTg).reshape((2,) * 8)
    l5 = np.transpose(l5, (0, 2, 1, 3, 4, 6, 5, 7)).reshape(16, 16)

    left = [l5 @ a @ b for a in l4_bases for b in l3_bases]   # 4  (16,16)
    right = [a @ b for a in l2_bases for b in l1_bases]        # 16 (16,16)
    return np.stack(left + right).astype(np.float32)           # (20, 16, 16)


_GATE_MATS = jnp.asarray(_build_mats())


# ------------------------------- Pallas kernel -------------------------------

def circuit_kernel(coef_ref, mats_ref, o_ref):
    # coef_ref : SMEM f32[21] = [ left coeffs (4) | right coeffs (16) | fc_bias ]
    # mats_ref : VMEM f32[21,16,16] = [ LEFT bases (4) | RIGHT bases (16) | W ]
    c = coef_ref
    m = mats_ref

    # LEFT = L5 @ L4 @ L3 : 4-term scalar-weighted sum (VPU FMAs).
    left = c[0] * m[0] + c[1] * m[1] + c[2] * m[2] + c[3] * m[3]

    # RIGHT = L2 @ L1 : 16-term scalar-weighted sum (VPU FMAs, unrolled).
    right = c[4] * m[4]
    for k in range(5, 20):
        right = right + c[k] * m[k]

    # Single MXU push (dependency depth 1).
    r = jnp.dot(left, right, preferred_element_type=jnp.float32)

    # fc(result.view(-1)) == sum(result * W_row_major) + bias, then sigmoid.
    acc = jnp.sum(r * m[20], keepdims=True) + c[20]
    o_ref[...] = jax.nn.sigmoid(acc)


# ------------------------------- wrapper --------------------------------------

@jax.jit
def quantum_circuit_forward(thetas, fc_weight, fc_bias):
    """thetas: (6,) f32; fc_weight: (1, 256) f32; fc_bias: (1,) f32 -> (1,) f32."""
    half = thetas.astype(jnp.float32) * 0.5
    cs = jnp.cos(half)
    sn = jnp.sin(half)

    l1c = jnp.stack([cs[0] * cs[1], cs[0] * sn[1], sn[0] * cs[1], sn[0] * sn[1]])
    l2c = jnp.stack([cs[2] * cs[3], cs[2] * sn[3], sn[2] * cs[3], sn[2] * sn[3]])
    l3c = jnp.stack([cs[4], sn[4]])
    l4c = jnp.stack([cs[5], sn[5]])

    left_c = jnp.outer(l4c, l3c).reshape(-1)     # (4,)  matches LEFT basis order
    right_c = jnp.outer(l2c, l1c).reshape(-1)    # (16,) matches RIGHT basis order
    coef = jnp.concatenate(
        [left_c, right_c, fc_bias.astype(jnp.float32)])        # (21,)

    # Single VMEM operand: constant gate bases + fc weight as the last slice.
    w2d = fc_weight.reshape(16, 16).astype(jnp.float32)        # row-major == view(-1)
    mats = jnp.concatenate([_GATE_MATS, w2d[None]], axis=0)    # (21, 16, 16)

    smem = pl.BlockSpec(memory_space=pltpu.MemorySpace.SMEM)
    vmem = pl.BlockSpec(memory_space=pltpu.MemorySpace.VMEM)
    out = pl.pallas_call(
        circuit_kernel,
        out_shape=jax.ShapeDtypeStruct((1, 1), jnp.float32),
        in_specs=[smem, vmem],
        out_specs=vmem,
    )(coef, mats)
    return out.reshape(1)


# ------------------------------ numpy reference -------------------------------

def _reference_forward(thetas, fc_weight, fc_bias):
    t = np.asarray(thetas, dtype=np.float64)

    def ry(th):
        ch, sh = np.cos(th / 2.0), np.sin(th / 2.0)
        return np.array([[ch, -sh], [sh, ch]], dtype=np.float64)

    l1 = _kron(_Xg, _Xg, ry(t[0]), ry(t[1]))
    l2 = _kron(ry(t[2]), ry(t[3]), _CNOTg)
    l3 = _kron(_CNOTg, _Ig, ry(t[4]))
    l4 = _kron(_Ig, ry(t[5]), _Ig, _Ig)
    l5 = _kron(_Ig, _Ig, _CNOTg).reshape((2,) * 8)
    l5 = np.transpose(l5, (0, 2, 1, 3, 4, 6, 5, 7)).reshape(16, 16)
    r = l5 @ (l4 @ (l3 @ (l2 @ l1)))
    z = float(np.asarray(fc_weight, np.float64).reshape(-1) @ r.reshape(-1)
              + float(np.asarray(fc_bias, np.float64)[0]))
    return 1.0 / (1.0 + np.exp(-z))


# ---------------------------------- driver -----------------------------------

if __name__ == "__main__":
    key = jax.random.PRNGKey(0)
    k_theta, k_w, k_b = jax.random.split(key, 3)

    # theta1..theta6 ~ U[0, 1)  (torch.rand(1) each)
    thetas = jax.random.uniform(k_theta, (6,), dtype=jnp.float32)

    # nn.Linear(256, 1) default init: U(-1/sqrt(256), 1/sqrt(256))
    bound = float(1.0 / np.sqrt(256.0))
    fc_weight = jax.random.uniform(
        k_w, (1, 256), dtype=jnp.float32, minval=-bound, maxval=bound
    )
    fc_bias = jax.random.uniform(
        k_b, (1,), dtype=jnp.float32, minval=-bound, maxval=bound
    )

    out = quantum_circuit_forward(thetas, fc_weight, fc_bias)
    out = jax.block_until_ready(out)
    assert out.shape == (1,) and out.dtype == jnp.float32

    ref = _reference_forward(np.asarray(thetas), np.asarray(fc_weight),
                             np.asarray(fc_bias))
    assert abs(float(out[0]) - ref) < 1e-4, (float(out[0]), ref)
    print("KERNEL_OK")
</pallas_src>

<mosaic_0001>
module attributes {stable_mosaic.version = 11 : i64} {
  func.func @circuit_kernel(%arg0: memref<21xf32, #tpu.memory_space<smem>>, %arg1: memref<21x16x16xf32, #tpu.memory_space<vmem>>, %arg2: memref<1x1xf32, #tpu.memory_space<vmem>>) attributes {dimension_semantics = [], scalar_prefetch = 0 : i64, scratch_operands = 0 : i64, tpu.core_type = #tpu.core_type<tc>} {
    %c0 = arith.constant 0 : index
    %0 = memref.load %arg0[%c0] : memref<21xf32, #tpu.memory_space<smem>>
    %c0_0 = arith.constant 0 : index
    %c0_1 = arith.constant 0 : index
    %c0_2 = arith.constant 0 : index
    %1 = vector.load %arg1[%c0_0, %c0_1, %c0_2] : memref<21x16x16xf32, #tpu.memory_space<vmem>>, vector<1x16x16xf32>
    %2 = vector.shape_cast %1 : vector<1x16x16xf32> to vector<16x16xf32>
    %3 = vector.broadcast %0 : f32 to vector<16x16xf32>
    %4 = arith.mulf %3, %2 : vector<16x16xf32>
    %c1 = arith.constant 1 : index
    %5 = memref.load %arg0[%c1] : memref<21xf32, #tpu.memory_space<smem>>
    %c1_3 = arith.constant 1 : index
    %c0_4 = arith.constant 0 : index
    %c0_5 = arith.constant 0 : index
    %6 = vector.load %arg1[%c1_3, %c0_4, %c0_5] : memref<21x16x16xf32, #tpu.memory_space<vmem>>, vector<1x16x16xf32>
    %7 = vector.shape_cast %6 : vector<1x16x16xf32> to vector<16x16xf32>
    %8 = vector.broadcast %5 : f32 to vector<16x16xf32>
    %9 = arith.mulf %8, %7 : vector<16x16xf32>
    %10 = arith.addf %4, %9 : vector<16x16xf32>
    %c2 = arith.constant 2 : index
    %11 = memref.load %arg0[%c2] : memref<21xf32, #tpu.memory_space<smem>>
    %c2_6 = arith.constant 2 : index
    %c0_7 = arith.constant 0 : index
    %c0_8 = arith.constant 0 : index
    %12 = vector.load %arg1[%c2_6, %c0_7, %c0_8] : memref<21x16x16xf32, #tpu.memory_space<vmem>>, vector<1x16x16xf32>
    %13 = vector.shape_cast %12 : vector<1x16x16xf32> to vector<16x16xf32>
    %14 = vector.broadcast %11 : f32 to vector<16x16xf32>
    %15 = arith.mulf %14, %13 : vector<16x16xf32>
    %16 = arith.addf %10, %15 : vector<16x16xf32>
    %c3 = arith.constant 3 : index
    %17 = memref.load %arg0[%c3] : memref<21xf32, #tpu.memory_space<smem>>
    %c3_9 = arith.constant 3 : index
    %c0_10 = arith.constant 0 : index
    %c0_11 = arith.constant 0 : index
    %18 = vector.load %arg1[%c3_9, %c0_10, %c0_11] : memref<21x16x16xf32, #tpu.memory_space<vmem>>, vector<1x16x16xf32>
    %19 = vector.shape_cast %18 : vector<1x16x16xf32> to vector<16x16xf32>
    %20 = vector.broadcast %17 : f32 to vector<16x16xf32>
    %21 = arith.mulf %20, %19 : vector<16x16xf32>
    %22 = arith.addf %16, %21 : vector<16x16xf32>
    %c4 = arith.constant 4 : index
    %23 = memref.load %arg0[%c4] : memref<21xf32, #tpu.memory_space<smem>>
    %c4_12 = arith.constant 4 : index
    %c0_13 = arith.constant 0 : index
    %c0_14 = arith.constant 0 : index
    %24 = vector.load %arg1[%c4_12, %c0_13, %c0_14] : memref<21x16x16xf32, #tpu.memory_space<vmem>>, vector<1x16x16xf32>
    %25 = vector.shape_cast %24 : vector<1x16x16xf32> to vector<16x16xf32>
    %26 = vector.broadcast %23 : f32 to vector<16x16xf32>
    %27 = arith.mulf %26, %25 : vector<16x16xf32>
    %c5 = arith.constant 5 : index
    %28 = memref.load %arg0[%c5] : memref<21xf32, #tpu.memory_space<smem>>
    %c5_15 = arith.constant 5 : index
    %c0_16 = arith.constant 0 : index
    %c0_17 = arith.constant 0 : index
    %29 = vector.load %arg1[%c5_15, %c0_16, %c0_17] : memref<21x16x16xf32, #tpu.memory_space<vmem>>, vector<1x16x16xf32>
    %30 = vector.shape_cast %29 : vector<1x16x16xf32> to vector<16x16xf32>
    %31 = vector.broadcast %28 : f32 to vector<16x16xf32>
    %32 = arith.mulf %31, %30 : vector<16x16xf32>
    %33 = arith.addf %27, %32 : vector<16x16xf32>
    %c6 = arith.constant 6 : index
    %34 = memref.load %arg0[%c6] : memref<21xf32, #tpu.memory_space<smem>>
    %c6_18 = arith.constant 6 : index
    %c0_19 = arith.constant 0 : index
    %c0_20 = arith.constant 0 : index
    %35 = vector.load %arg1[%c6_18, %c0_19, %c0_20] : memref<21x16x16xf32, #tpu.memory_space<vmem>>, vector<1x16x16xf32>
    %36 = vector.shape_cast %35 : vector<1x16x16xf32> to vector<16x16xf32>
    %37 = vector.broadcast %34 : f32 to vector<16x16xf32>
    %38 = arith.mulf %37, %36 : vector<16x16xf32>
    %39 = arith.addf %33, %38 : vector<16x16xf32>
    %c7 = arith.constant 7 : index
    %40 = memref.load %arg0[%c7] : memref<21xf32, #tpu.memory_space<smem>>
    %c7_21 = arith.constant 7 : index
    %c0_22 = arith.constant 0 : index
    %c0_23 = arith.constant 0 : index
    %41 = vector.load %arg1[%c7_21, %c0_22, %c0_23] : memref<21x16x16xf32, #tpu.memory_space<vmem>>, vector<1x16x16xf32>
    %42 = vector.shape_cast %41 : vector<1x16x16xf32> to vector<16x16xf32>
    %43 = vector.broadcast %40 : f32 to vector<16x16xf32>
    %44 = arith.mulf %43, %42 : vector<16x16xf32>
    %45 = arith.addf %39, %44 : vector<16x16xf32>
    %c8 = arith.constant 8 : index
    %46 = memref.load %arg0[%c8] : memref<21xf32, #tpu.memory_space<smem>>
    %c8_24 = arith.constant 8 : index
    %c0_25 = arith.constant 0 : index
    %c0_26 = arith.constant 0 : index
    %47 = vector.load %arg1[%c8_24, %c0_25, %c0_26] : memref<21x16x16xf32, #tpu.memory_space<vmem>>, vector<1x16x16xf32>
    %48 = vector.shape_cast %47 : vector<1x16x16xf32> to vector<16x16xf32>
    %49 = vector.broadcast %46 : f32 to vector<16x16xf32>
    %50 = arith.mulf %49, %48 : vector<16x16xf32>
    %51 = arith.addf %45, %50 : vector<16x16xf32>
    %c9 = arith.constant 9 : index
    %52 = memref.load %arg0[%c9] : memref<21xf32, #tpu.memory_space<smem>>
    %c9_27 = arith.constant 9 : index
    %c0_28 = arith.constant 0 : index
    %c0_29 = arith.constant 0 : index
    %53 = vector.load %arg1[%c9_27, %c0_28, %c0_29] : memref<21x16x16xf32, #tpu.memory_space<vmem>>, vector<1x16x16xf32>
    %54 = vector.shape_cast %53 : vector<1x16x16xf32> to vector<16x16xf32>
    %55 = vector.broadcast %52 : f32 to vector<16x16xf32>
    %56 = arith.mulf %55, %54 : vector<16x16xf32>
    %57 = arith.addf %51, %56 : vector<16x16xf32>
    %c10 = arith.constant 10 : index
    %58 = memref.load %arg0[%c10] : memref<21xf32, #tpu.memory_space<smem>>
    %c10_30 = arith.constant 10 : index
    %c0_31 = arith.constant 0 : index
    %c0_32 = arith.constant 0 : index
    %59 = vector.load %arg1[%c10_30, %c0_31, %c0_32] : memref<21x16x16xf32, #tpu.memory_space<vmem>>, vector<1x16x16xf32>
    %60 = vector.shape_cast %59 : vector<1x16x16xf32> to vector<16x16xf32>
    %61 = vector.broadcast %58 : f32 to vector<16x16xf32>
    %62 = arith.mulf %61, %60 : vector<16x16xf32>
    %63 = arith.addf %57, %62 : vector<16x16xf32>
    %c11 = arith.constant 11 : index
    %64 = memref.load %arg0[%c11] : memref<21xf32, #tpu.memory_space<smem>>
    %c11_33 = arith.constant 11 : index
    %c0_34 = arith.constant 0 : index
    %c0_35 = arith.constant 0 : index
    %65 = vector.load %arg1[%c11_33, %c0_34, %c0_35] : memref<21x16x16xf32, #tpu.memory_space<vmem>>, vector<1x16x16xf32>
    %66 = vector.shape_cast %65 : vector<1x16x16xf32> to vector<16x16xf32>
    %67 = vector.broadcast %64 : f32 to vector<16x16xf32>
    %68 = arith.mulf %67, %66 : vector<16x16xf32>
    %69 = arith.addf %63, %68 : vector<16x16xf32>
    %c12 = arith.constant 12 : index
    %70 = memref.load %arg0[%c12] : memref<21xf32, #tpu.memory_space<smem>>
    %c12_36 = arith.constant 12 : index
    %c0_37 = arith.constant 0 : index
    %c0_38 = arith.constant 0 : index
    %71 = vector.load %arg1[%c12_36, %c0_37, %c0_38] : memref<21x16x16xf32, #tpu.memory_space<vmem>>, vector<1x16x16xf32>
    %72 = vector.shape_cast %71 : vector<1x16x16xf32> to vector<16x16xf32>
    %73 = vector.broadcast %70 : f32 to vector<16x16xf32>
    %74 = arith.mulf %73, %72 : vector<16x16xf32>
    %75 = arith.addf %69, %74 : vector<16x16xf32>
    %c13 = arith.constant 13 : index
    %76 = memref.load %arg0[%c13] : memref<21xf32, #tpu.memory_space<smem>>
    %c13_39 = arith.constant 13 : index
    %c0_40 = arith.constant 0 : index
    %c0_41 = arith.constant 0 : index
    %77 = vector.load %arg1[%c13_39, %c0_40, %c0_41] : memref<21x16x16xf32, #tpu.memory_space<vmem>>, vector<1x16x16xf32>
    %78 = vector.shape_cast %77 : vector<1x16x16xf32> to vector<16x16xf32>
    %79 = vector.broadcast %76 : f32 to vector<16x16xf32>
    %80 = arith.mulf %79, %78 : vector<16x16xf32>
    %81 = arith.addf %75, %80 : vector<16x16xf32>
    %c14 = arith.constant 14 : index
    %82 = memref.load %arg0[%c14] : memref<21xf32, #tpu.memory_space<smem>>
    %c14_42 = arith.constant 14 : index
    %c0_43 = arith.constant 0 : index
    %c0_44 = arith.constant 0 : index
    %83 = vector.load %arg1[%c14_42, %c0_43, %c0_44] : memref<21x16x16xf32, #tpu.memory_space<vmem>>, vector<1x16x16xf32>
    %84 = vector.shape_cast %83 : vector<1x16x16xf32> to vector<16x16xf32>
    %85 = vector.broadcast %82 : f32 to vector<16x16xf32>
    %86 = arith.mulf %85, %84 : vector<16x16xf32>
    %87 = arith.addf %81, %86 : vector<16x16xf32>
    %c15 = arith.constant 15 : index
    %88 = memref.load %arg0[%c15] : memref<21xf32, #tpu.memory_space<smem>>
    %c15_45 = arith.constant 15 : index
    %c0_46 = arith.constant 0 : index
    %c0_47 = arith.constant 0 : index
    %89 = vector.load %arg1[%c15_45, %c0_46, %c0_47] : memref<21x16x16xf32, #tpu.memory_space<vmem>>, vector<1x16x16xf32>
    %90 = vector.shape_cast %89 : vector<1x16x16xf32> to vector<16x16xf32>
    %91 = vector.broadcast %88 : f32 to vector<16x16xf32>
    %92 = arith.mulf %91, %90 : vector<16x16xf32>
    %93 = arith.addf %87, %92 : vector<16x16xf32>
    %c16 = arith.constant 16 : index
    %94 = memref.load %arg0[%c16] : memref<21xf32, #tpu.memory_space<smem>>
    %c16_48 = arith.constant 16 : index
    %c0_49 = arith.constant 0 : index
    %c0_50 = arith.constant 0 : index
    %95 = vector.load %arg1[%c16_48, %c0_49, %c0_50] : memref<21x16x16xf32, #tpu.memory_space<vmem>>, vector<1x16x16xf32>
    %96 = vector.shape_cast %95 : vector<1x16x16xf32> to vector<16x16xf32>
    %97 = vector.broadcast %94 : f32 to vector<16x16xf32>
    %98 = arith.mulf %97, %96 : vector<16x16xf32>
    %99 = arith.addf %93, %98 : vector<16x16xf32>
    %c17 = arith.constant 17 : index
    %100 = memref.load %arg0[%c17] : memref<21xf32, #tpu.memory_space<smem>>
    %c17_51 = arith.constant 17 : index
    %c0_52 = arith.constant 0 : index
    %c0_53 = arith.constant 0 : index
    %101 = vector.load %arg1[%c17_51, %c0_52, %c0_53] : memref<21x16x16xf32, #tpu.memory_space<vmem>>, vector<1x16x16xf32>
    %102 = vector.shape_cast %101 : vector<1x16x16xf32> to vector<16x16xf32>
    %103 = vector.broadcast %100 : f32 to vector<16x16xf32>
    %104 = arith.mulf %103, %102 : vector<16x16xf32>
    %105 = arith.addf %99, %104 : vector<16x16xf32>
    %c18 = arith.constant 18 : index
    %106 = memref.load %arg0[%c18] : memref<21xf32, #tpu.memory_space<smem>>
    %c18_54 = arith.constant 18 : index
    %c0_55 = arith.constant 0 : index
    %c0_56 = arith.constant 0 : index
    %107 = vector.load %arg1[%c18_54, %c0_55, %c0_56] : memref<21x16x16xf32, #tpu.memory_space<vmem>>, vector<1x16x16xf32>
    %108 = vector.shape_cast %107 : vector<1x16x16xf32> to vector<16x16xf32>
    %109 = vector.broadcast %106 : f32 to vector<16x16xf32>
    %110 = arith.mulf %109, %108 : vector<16x16xf32>
    %111 = arith.addf %105, %110 : vector<16x16xf32>
    %c19 = arith.constant 19 : index
    %112 = memref.load %arg0[%c19] : memref<21xf32, #tpu.memory_space<smem>>
    %c19_57 = arith.constant 19 : index
    %c0_58 = arith.constant 0 : index
    %c0_59 = arith.constant 0 : index
    %113 = vector.load %arg1[%c19_57, %c0_58, %c0_59] : memref<21x16x16xf32, #tpu.memory_space<vmem>>, vector<1x16x16xf32>
    %114 = vector.shape_cast %113 : vector<1x16x16xf32> to vector<16x16xf32>
    %115 = vector.broadcast %112 : f32 to vector<16x16xf32>
    %116 = arith.mulf %115, %114 : vector<16x16xf32>
    %117 = arith.addf %111, %116 : vector<16x16xf32>
    %cst = arith.constant dense<0.000000e+00> : vector<16x16xf32>
    %118 = tpu.matmul %22, %117, %cst {dimension_numbers = #tpu.dot_dimension_numbers<[1], [0], [0], [1], [0, 0, 1, 1], [], []>} : vector<16x16xf32>, vector<16x16xf32>, vector<16x16xf32> -> vector<16x16xf32>
    %c20 = arith.constant 20 : index
    %c0_60 = arith.constant 0 : index
    %c0_61 = arith.constant 0 : index
    %119 = vector.load %arg1[%c20, %c0_60, %c0_61] : memref<21x16x16xf32, #tpu.memory_space<vmem>>, vector<1x16x16xf32>
    %120 = vector.shape_cast %119 : vector<1x16x16xf32> to vector<16x16xf32>
    %121 = arith.mulf %118, %120 : vector<16x16xf32>
    %122 = vector.shape_cast %121 : vector<16x16xf32> to vector<1x16x16xf32>
    %cst_62 = arith.constant dense<0.000000e+00> : vector<1xf32>
    %123 = vector.multi_reduction <add>, %122, %cst_62 [1, 2] : vector<1x16x16xf32> to vector<1xf32>
    %124 = vector.shape_cast %123 : vector<1xf32> to vector<1x1x1xf32>
    %125 = vector.extract %124[0, 0, 0] : f32 from vector<1x1x1xf32>
    %126 = vector.broadcast %125 : f32 to vector<1x1xf32>
    %c20_63 = arith.constant 20 : index
    %127 = memref.load %arg0[%c20_63] : memref<21xf32, #tpu.memory_space<smem>>
    %128 = vector.broadcast %127 : f32 to vector<1x1xf32>
    %129 = arith.addf %126, %128 : vector<1x1xf32>
    %130 = arith.negf %129 : vector<1x1xf32>
    %131 = math.exp %130 : vector<1x1xf32>
    %cst_64 = arith.constant 1.000000e+00 : f32
    %132 = vector.broadcast %cst_64 : f32 to vector<1x1xf32>
    %133 = arith.addf %132, %131 : vector<1x1xf32>
    %134 = arith.divf %132, %133 : vector<1x1xf32>
    %c0_65 = arith.constant 0 : index
    %c0_66 = arith.constant 0 : index
    %135 = vector.load %arg2[%c0_65, %c0_66] : memref<1x1xf32, #tpu.memory_space<vmem>>, vector<1x1xf32>
    tpu.vector_store %arg2[%c0_65, %c0_66], %134 {strides = array<i32>} : memref<1x1xf32, #tpu.memory_space<vmem>>, vector<1x1xf32>,
    return
  }
}

</mosaic_0001>

<llo_original>
// kernel: quantum_circuit_forward.1
$region0: #{quantum_circuit_forward.1}
  #allocation0 [shape = 'u32[]', space=smem, size = 0x4, offset = 0x4, fixed_abs, tag = 'smem constant byte address 0x4 - core index']
  #allocation1 [shape = 'u32[72,128]{1,0:T(1,128)}', space=vmem, size = 0x9000, scoped, tag = 'internal scratch']
  %s0 = inlined_call_operand.vmem [shape: f32[21], index: 0, kind: input, shape index: {}]
  %s1 = inlined_call_operand.vmem [shape: f32[21,16,16], index: 1, kind: input, shape index: {}]
  %s2 = inlined_call_operand.hbm [shape: f32[1,1], index: 2, kind: output, shape index: {}]
  %s3 = sld [smem:[#allocation0]]
  $region22: #{quantum_circuit_forward.1} parent=0
    _
  %s5 = ssub.s32 1, %s3
  %s6 = scalar_select 0, %s5, %s3
  $region1: #{quantum_circuit_forward.1} parent=0
    #allocation2 [shape = 'u8[512]{0}', space=smem, size = 0x200, scoped, tag = 'input window, operand 0, single buffered']
    #allocation3 [shape = 's32[1]{0}', space=sflag, size = 0x4, scoped, tag = 'scoped memory for quantum_circuit_forward.1']
    #allocation4 [shape = 's32[1]{0}', space=sflag, size = 0x4, scoped, tag = 'scoped memory for quantum_circuit_forward.1']
    #allocation5 [shape = 'u8[512]{0}', space=vmem, size = 0x400, scoped, tag = 'output window, operand 0, single buffered']
    %7 = vsyncpa [#allocation4], 0
    %8 = vsyncpa [#allocation3], 0
    // Predicated region
    $region2: #{quantum_circuit_forward.1} parent=1 // pred_check
      _
    $region3: #{quantum_circuit_forward.1} parent=1 // pred_check_branch
      %10 = sbr.rel (0) target = $region5
    $region4: #{quantum_circuit_forward.1} parent=1 // pred_region
      %12 = vsyncadd [#allocation4], 0
      %s14 = sshll.u32 %s0, 4
      %s15 = int_to_ptr.vmem [resolvable:$true] %s14
      %17 = dma.vmem_to_smem %s15, 16, [#allocation2], [#allocation4]
    $region5: #{quantum_circuit_forward.1} parent=1 // pred_fallthru
      _
    // Predicated region
    $region6: #{quantum_circuit_forward.1} parent=1 // pred_check
      _
    $region7: #{quantum_circuit_forward.1} parent=1 // pred_check_branch
      %19 = sbr.rel (0) target = $region9
    $region8: #{quantum_circuit_forward.1} parent=1 // pred_region
      _
    $region9: #{quantum_circuit_forward.1} parent=1 // pred_fallthru
      _
    // Predicated region
    $region10: #{quantum_circuit_forward.1} parent=1 // pred_check
      _
    $region11: #{quantum_circuit_forward.1} parent=1 // pred_check_branch
      %21 = sbr.rel (0) target = $region13
    $region12: #{quantum_circuit_forward.1} parent=1 // pred_region
      %23 = dma.done [#allocation4], 16
    $region13: #{quantum_circuit_forward.1} parent=1 // pred_fallthru
      _
    %24 = sfence
    %s25 = sld [smem:[#allocation2]]
    %v26 = vld [vmem:[%s1] sm:$0xff]
    %v27 = vld [vmem:[%s1 + $0x8] sm:$0xff]
    %v28 = vstv %s25
    %v29 = vmul.f32 %v28, %v26
    %v30 = vmul.f32 %v28, %v27
    %s31 = sld [smem:[#allocation2 + $0x1]]
    %s32 = scalar_lea.vmem %s1, 16
    %v33 = vld [vmem:[%s32] sm:$0xff]
    %v34 = vld [vmem:[%s32 + $0x8] sm:$0xff]
    %v35 = vstv %s31
    %v36 = vmul.f32 %v35, %v33
    %v37 = vmul.f32 %v35, %v34
    %v38 = vadd.f32 %v29, %v36
    %v39 = vadd.f32 %v30, %v37
    %s40 = sld [smem:[#allocation2 + $0x2]]
    %s41 = scalar_lea.vmem %s1, 32
    %v42 = vld [vmem:[%s41] sm:$0xff]
    %v43 = vld [vmem:[%s41 + $0x8] sm:$0xff]
    %v44 = vstv %s40
    %v45 = vmul.f32 %v44, %v42
    %v46 = vmul.f32 %v44, %v43
    %v47 = vadd.f32 %v38, %v45
    %v48 = vadd.f32 %v39, %v46
    %s49 = sld [smem:[#allocation2 + $0x3]]
    %s50 = scalar_lea.vmem %s1, 48
    %v51 = vld [vmem:[%s50] sm:$0xff]
    %v52 = vld [vmem:[%s50 + $0x8] sm:$0xff]
    %v53 = vstv %s49
    %v54 = vmul.f32 %v53, %v51
    %v55 = vmul.f32 %v53, %v52
    %v56 = vadd.f32 %v47, %v54
    %v57 = vadd.f32 %v48, %v55
    %s58 = sld [smem:[#allocation2 + $0x4]]
    %s59 = scalar_lea.vmem %s1, 64
    %v60 = vld [vmem:[%s59] sm:$0xff]
    %v61 = vld [vmem:[%s59 + $0x8] sm:$0xff]
    %v62 = vstv %s58
    %v63 = vmul.f32 %v62, %v60
    %v64 = vmul.f32 %v62, %v61
    %s65 = sld [smem:[#allocation2 + $0x5]]
    %s66 = scalar_lea.vmem %s1, 80
    %v67 = vld [vmem:[%s66] sm:$0xff]
    %v68 = vld [vmem:[%s66 + $0x8] sm:$0xff]
    %v69 = vstv %s65
    %v70 = vmul.f32 %v69, %v67
    %v71 = vmul.f32 %v69, %v68
    %v72 = vadd.f32 %v63, %v70
    %v73 = vadd.f32 %v64, %v71
    %s74 = sld [smem:[#allocation2 + $0x6]]
    %s75 = scalar_lea.vmem %s1, 96
    %v76 = vld [vmem:[%s75] sm:$0xff]
    %v77 = vld [vmem:[%s75 + $0x8] sm:$0xff]
    %v78 = vstv %s74
    %v79 = vmul.f32 %v78, %v76
    %v80 = vmul.f32 %v78, %v77
    %v81 = vadd.f32 %v72, %v79
    %v82 = vadd.f32 %v73, %v80
    %s83 = sld [smem:[#allocation2 + $0x7]]
    %s84 = scalar_lea.vmem %s1, 112
    %v85 = vld [vmem:[%s84] sm:$0xff]
    %v86 = vld [vmem:[%s84 + $0x8] sm:$0xff]
    %v87 = vstv %s83
    %v88 = vmul.f32 %v87, %v85
    %v89 = vmul.f32 %v87, %v86
    %v90 = vadd.f32 %v81, %v88
    %v91 = vadd.f32 %v82, %v89
    %s92 = sld [smem:[#allocation2 + $0x8]]
    %s93 = scalar_lea.vmem %s1, 128
    %v94 = vld [vmem:[%s93] sm:$0xff]
    %v95 = vld [vmem:[%s93 + $0x8] sm:$0xff]
    %v96 = vstv %s92
    %v97 = vmul.f32 %v96, %v94
    %v98 = vmul.f32 %v96, %v95
    %v99 = vadd.f32 %v90, %v97
    %v100 = vadd.f32 %v91, %v98
    %s101 = sld [smem:[#allocation2 + $0x9]]
    %s102 = scalar_lea.vmem %s1, 144
    %v103 = vld [vmem:[%s102] sm:$0xff]
    %v104 = vld [vmem:[%s102 + $0x8] sm:$0xff]
    %v105 = vstv %s101
    %v106 = vmul.f32 %v105, %v103
    %v107 = vmul.f32 %v105, %v104
    %v108 = vadd.f32 %v99, %v106
    %v109 = vadd.f32 %v100, %v107
    %s110 = sld [smem:[#allocation2 + $0xa]]
    %s111 = scalar_lea.vmem %s1, 160
    %v112 = vld [vmem:[%s111] sm:$0xff]
    %v113 = vld [vmem:[%s111 + $0x8] sm:$0xff]
    %v114 = vstv %s110
    %v115 = vmul.f32 %v114, %v112
    %v116 = vmul.f32 %v114, %v113
    %v117 = vadd.f32 %v108, %v115
    %v118 = vadd.f32 %v109, %v116
    %s119 = sld [smem:[#allocation2 + $0xb]]
    %s120 = scalar_lea.vmem %s1, 176
    %v121 = vld [vmem:[%s120] sm:$0xff]
    %v122 = vld [vmem:[%s120 + $0x8] sm:$0xff]
    %v123 = vstv %s119
    %v124 = vmul.f32 %v123, %v121
    %v125 = vmul.f32 %v123, %v122
    %v126 = vadd.f32 %v117, %v124
    %v127 = vadd.f32 %v118, %v125
    %s128 = sld [smem:[#allocation2 + $0xc]]
    %s129 = scalar_lea.vmem %s1, 192
    %v130 = vld [vmem:[%s129] sm:$0xff]
    %v131 = vld [vmem:[%s129 + $0x8] sm:$0xff]
    %v132 = vstv %s128
    %v133 = vmul.f32 %v132, %v130
    %v134 = vmul.f32 %v132, %v131
    %v135 = vadd.f32 %v126, %v133
    %v136 = vadd.f32 %v127, %v134
    %s137 = sld [smem:[#allocation2 + $0xd]]
    %s138 = scalar_lea.vmem %s1, 208
    %v139 = vld [vmem:[%s138] sm:$0xff]
    %v140 = vld [vmem:[%s138 + $0x8] sm:$0xff]
    %v141 = vstv %s137
    %v142 = vmul.f32 %v141, %v139
    %v143 = vmul.f32 %v141, %v140
    %v144 = vadd.f32 %v135, %v142
    %v145 = vadd.f32 %v136, %v143
    %s146 = sld [smem:[#allocation2 + $0xe]]
    %s147 = scalar_lea.vmem %s1, 224
    %v148 = vld [vmem:[%s147] sm:$0xff]
    %v149 = vld [vmem:[%s147 + $0x8] sm:$0xff]
    %v150 = vstv %s146
    %v151 = vmul.f32 %v150, %v148
    %v152 = vmul.f32 %v150, %v149
    %v153 = vadd.f32 %v144, %v151
    %v154 = vadd.f32 %v145, %v152
    %s155 = sld [smem:[#allocation2 + $0xf]]
    %s156 = scalar_lea.vmem %s1, 240
    %v157 = vld [vmem:[%s156] sm:$0xff]
    %v158 = vld [vmem:[%s156 + $0x8] sm:$0xff]
    %v159 = vstv %s155
    %v160 = vmul.f32 %v159, %v157
    %v161 = vmul.f32 %v159, %v158
    %v162 = vadd.f32 %v153, %v160
    %v163 = vadd.f32 %v154, %v161
    %s164 = sld [smem:[#allocation2 + $0x10]]
    %s165 = scalar_lea.vmem %s1, 256
    %v166 = vld [vmem:[%s165] sm:$0xff]
    %v167 = vld [vmem:[%s165 + $0x8] sm:$0xff]
    %v168 = vstv %s164
    %v169 = vmul.f32 %v168, %v166
    %v170 = vmul.f32 %v168, %v167
    %v171 = vadd.f32 %v162, %v169
    %v172 = vadd.f32 %v163, %v170
    %s173 = sld [smem:[#allocation2 + $0x11]]
    %s174 = scalar_lea.vmem %s1, 272
    %v175 = vld [vmem:[%s174] sm:$0xff]
    %v176 = vld [vmem:[%s174 + $0x8] sm:$0xff]
    %v177 = vstv %s173
    %v178 = vmul.f32 %v177, %v175
    %v179 = vmul.f32 %v177, %v176
    %v180 = vadd.f32 %v171, %v178
    %v181 = vadd.f32 %v172, %v179
    %s182 = sld [smem:[#allocation2 + $0x12]]
    %s183 = scalar_lea.vmem %s1, 288
    %v184 = vld [vmem:[%s183] sm:$0xff]
    %v185 = vld [vmem:[%s183 + $0x8] sm:$0xff]
    %v186 = vstv %s182
    %v187 = vmul.f32 %v186, %v184
    %v188 = vmul.f32 %v186, %v185
    %v189 = vadd.f32 %v180, %v187
    %v190 = vadd.f32 %v181, %v188
    %s191 = sld [smem:[#allocation2 + $0x13]]
    %s192 = scalar_lea.vmem %s1, 304
    %v193 = vld [vmem:[%s192] sm:$0xff]
    %v194 = vld [vmem:[%s192 + $0x8] sm:$0xff]
    %v195 = vstv %s191
    %v196 = vmul.f32 %v195, %v193
    %v197 = vmul.f32 %v195, %v194
    %v198 = vadd.f32 %v189, %v196
    %v199 = vadd.f32 %v190, %v197
    %vm200 = vcmask 130048
    %v202 = vsel %vm200, %v56, 0
    %v205 = vsel %vm200, %v57, 0
    %207 = vmatpush.msra.mxu0 0.0
    %208 = vmatpush.msra.mxu0 0.0
    %209 = vmatpush.msra.mxu0 0.0
    %210 = vmatpush.msra.mxu0 0.0
    %211 = vmatpush.msra.mxu0 0.0
    %212 = vmatpush.msra.mxu0 0.0
    %213 = vmatpush.msra.mxu0 0.0
    %214 = vmatpush.msra.mxu0 0.0
    %215 = vmatpush.msra.mxu0 0.0
    %216 = vmatpush.msra.mxu0 0.0
    %217 = vmatpush.msra.mxu0 0.0
    %218 = vmatpush.msra.mxu0 0.0
    %219 = vmatpush.msra.mxu0 0.0
    %220 = vmatpush.msra.mxu0 0.0
    %221 = vmatpush.msra.mxu0 %v199
    %222 = vmatpush.msra.mxu0 %v198
    %223 = vmatmul.f32.gmra.mxu0 %v202
    %v224 = vpop.f32.mrf.mxu0
    %v225 = vadd.f32 0.0, %v224
    %226 = vmatmul.f32.gmra.mxu0 %v205
    %v227 = vpop.f32.mrf.mxu0
    %v228 = vadd.f32 0.0, %v227
    %229 = vdwg.mxu0
    %s230 = scalar_lea.vmem %s1, 320
    %v231 = vld [vmem:[%s230] sm:$0xff]
    %v232 = vld [vmem:[%s230 + $0x8] sm:$0xff]
    %v233 = vmul.f32 %v225, %v231
    %v234 = vmul.f32 %v228, %v232
    %v235 = vsel %vm200, %v233, 0.0
    %v236 = vsel %vm200, %v234, 0.0
    %v237 = vadd.f32 %v235, %v236
    %238 = vadd.xlane.f32.xlu0 %v237
    %v239 = vpop.xlane.xlu0 %238
    %v240 = vrot.slane %v239, 4
    %v241 = vadd.f32 %v239, %v240
    %v242 = vrot.slane %v241, 2
    %v243 = vadd.f32 %v241, %v242
    %v244 = vrot.slane %v243, 1
    %v245 = vadd.f32 %v243, %v244
    %s246 = vtos %v245
    %v247 = vstv %s246
    %s248 = sld [smem:[#allocation2 + $0x14]]
    %v249 = vstv %s248
    %v250 = vadd.f32 %v247, %v249
    %v251 = vxor.u32 %v250, 2147483648
    %v252 = vmul.f32 %v251, 1.442695
    %v253 = vpow.pop %v252
    %v254 = vadd.f32 %v253, 1.0
    %v255 = vrcp.pop %v254
    %v256 = vmul.f32 %v254, %v255
    %v257 = vsub.f32 1.0, %v256
    %v258 = vmul.f32 %v255, %v257
    %v259 = vadd.f32 %v255, %v258
    %vm260 = vweird.f32 %v254
    %vm261 = vweird.f32 %v255
    %vm262 = vmor %vm260, %vm261
    %v263 = vsel %vm262, %v255, %v259
    %v264 = vand.u32 2147483647, %v254
    %vm265 = vcmp.eq.f32.partialorder %v264, 8.507059e+37
    %v266 = vand.u32 %v254, 2147483648
    %v267 = vor.u32 1.1754944e-38, %v266
    %v268 = vsel %vm265, %v267, %v263
    %v269 = vmul.f32 1.0, %v268
    %vm270 = vcmask 0
    %271 = vst.msk [vmem:[#allocation5] sm:$0x1] %vm270, %v269
    // Predicated region
    $region14: #{quantum_circuit_forward.1} parent=1 // pred_check
      _
    $region15: #{quantum_circuit_forward.1} parent=1 // pred_check_branch
      %273 = sbr.rel (0) target = $region17
    $region16: #{quantum_circuit_forward.1} parent=1 // pred_region
      %275 = vsyncadd [#allocation3], 0
      %s277 = sshll.u32 [#allocation5], 4
      %s278 = int_to_ptr.vmem [resolvable:$true] %s277
      %s279 = sshll.u32 %s2, 4
      %s280 = int_to_ptr.hbm [resolvable:$true] %s279
      %282 = dma.vmem_to_hbm [thread:$0]  %s278, 16, %s280, [#allocation3]
    $region17: #{quantum_circuit_forward.1} parent=1 // pred_fallthru
      _
    // Predicated region
    $region18: #{quantum_circuit_forward.1} parent=1 // pred_check
      _
    $region19: #{quantum_circuit_forward.1} parent=1 // pred_check_branch
      %284 = sbr.rel (0) target = $region21
    $region20: #{quantum_circuit_forward.1} parent=1 // pred_region
      %286 = dma.done [#allocation3], 16
    $region21: #{quantum_circuit_forward.1} parent=1 // pred_fallthru
      _
    %287 = vsyncpa [#allocation3], 1
    %288 = vsyncpa [#allocation4], 1

</llo_original>
